<compile_context>
chip_gen: v5e
topology: v5e:2x2
jax: 0.10.0
libtpu: 0.0.40
codegen_flags: <defaults>
</compile_context>

<pallas_src>
import functools

import jax
import jax.numpy as jnp
from jax.experimental import pallas as pl
from jax.experimental.pallas import tpu as pltpu


def _round_up(x, m):
    return (x + m - 1) // m * m


def _const_block(shape):
    """Whole-array block, same tile at every grid step -> resident in VMEM.

    Single-buffered (block index never changes).  Falls back to the default
    (double-buffered) spec if this JAX version lacks BlockSpec.pipeline_mode.
    """
    idx = lambda *_: (0,) * len(shape)
    try:
        return pl.BlockSpec(shape, idx, pipeline_mode=pl.Buffered(1))
    except (TypeError, AttributeError):
        return pl.BlockSpec(shape, idx)


def _time_chunking(t):
    # Chunk of Euler steps integrated per grid invocation.  Tc is a multiple
    # of 8 (sublane tile) and Tp a multiple of Tc (padded steps have dt=0).
    tc = min(64, _round_up(t, 8))
    tp = _round_up(t, tc)
    return tc, tp


# ------------------------- fused Euler solver kernels ------------------------ #

def _euler_self_kernel(dts_ref, fp_ref, w1_ref, b1_ref, w2_ref, b2_ref,
                       out_ref, z_ref, *, tc):
    # RHS:  f(z) = tanh(z @ W1 + b1) @ W2 + b2     (CasSelf, dropout=identity)
    # Euler: z_g = z_{g-1} + dt_g * f(z_{g-1}),  dt_0 = 0  =>  z_0 = first_point
    c = pl.program_id(0)

    @pl.when(c == 0)
    def _():
        z_ref[...] = fp_ref[...]

    lp, dp = z_ref.shape
    w1 = w1_ref[...]                                   # bf16, VMEM-resident
    w2 = w2_ref[...]                                   # bf16, VMEM-resident
    b1 = jnp.broadcast_to(b1_ref[...], (lp, dp))       # hoisted out of the loop
    b2 = jnp.broadcast_to(b2_ref[...], (lp, dp))

    z = z_ref[...]                                     # f32 state
    base = c * tc
    for t in range(tc):                                # static, fully unrolled
        dt = dts_ref[base + t]
        h = jnp.tanh(
            jnp.dot(z.astype(jnp.bfloat16), w1,
                    preferred_element_type=jnp.float32) + b1)
        dz = jnp.dot(h.astype(jnp.bfloat16), w2,
                     preferred_element_type=jnp.float32) + b2
        z = z + dt * dz
        out_ref[t] = z.astype(out_ref.dtype)
    z_ref[...] = z


def _euler_mem_kernel(dts_ref, fp_ref, wi_ref, bi_ref, memT_ref, mem_ref,
                      mask_ref, wo_ref, bo_ref, out_ref, z_ref, *, tc):
    # RHS (CasExternalMemory):
    #   h    = tanh(z @ W_in + b_in)                     [L, H]
    #   attn = softmax(h @ memory^T + mask)              [L, Mp]  (lane-dense)
    #   read = attn @ memory                             [L, H]
    #   f(z) = read @ W_out + b_out                      [L, D]
    c = pl.program_id(0)

    @pl.when(c == 0)
    def _():
        z_ref[...] = fp_ref[...]

    lp, dp = z_ref.shape
    mp = mem_ref.shape[0]
    wi = wi_ref[...]                                   # bf16
    wo = wo_ref[...]                                   # bf16
    mem_t = memT_ref[...]                              # bf16 [Dp, Mp]
    mem = mem_ref[...]                                 # bf16 [Mp, Dp]
    bi = jnp.broadcast_to(bi_ref[...], (lp, dp))       # hoisted
    bo = jnp.broadcast_to(bo_ref[...], (lp, dp))
    mask = jnp.broadcast_to(mask_ref[...], (lp, mp))   # -1e30 on padded slots

    z = z_ref[...]                                     # f32 state
    base = c * tc
    for t in range(tc):                                # static, fully unrolled
        dt = dts_ref[base + t]
        h = jnp.tanh(
            jnp.dot(z.astype(jnp.bfloat16), wi,
                    preferred_element_type=jnp.float32) + bi)
        scores = jnp.dot(h.astype(jnp.bfloat16), mem_t,
                         preferred_element_type=jnp.float32) + mask   # [L, Mp]
        m = jnp.max(scores, axis=-1, keepdims=True)
        e = jnp.exp(scores - m)
        denom = jnp.sum(e, axis=-1, keepdims=True)
        attn = e * pl.reciprocal(denom, approx=True)
        read = jnp.dot(attn.astype(jnp.bfloat16), mem,
                       preferred_element_type=jnp.float32)            # [L, Dp]
        dz = jnp.dot(read.astype(jnp.bfloat16), wo,
                     preferred_element_type=jnp.float32) + bo
        z = z + dt * dz
        out_ref[t] = z.astype(out_ref.dtype)
    z_ref[...] = z


# ------------------------------- host wrappers ------------------------------ #

def _dts(time_steps, tp):
    t = time_steps.astype(jnp.float32)
    d = jnp.concatenate([jnp.zeros((1,), jnp.float32), t[1:] - t[:-1]])
    return jnp.pad(d, (0, tp - t.shape[0]))


@jax.jit
def euler_solve_self(time_steps, first_point, w1, b1, w2, b2):
    L, D = first_point.shape
    T = time_steps.shape[0]
    Lp = _round_up(L, 8)
    Dp = w1.shape[0]                       # weights pre-padded to 128 lanes
    Tc, Tp = _time_chunking(T)
    fp = jnp.pad(first_point.astype(jnp.float32), ((0, Lp - L), (0, Dp - D)))
    dts = _dts(time_steps, Tp)

    vmem_need = (2 * 4 * Lp * Dp           # first_point + z scratch (f32)
                 + 2 * 2 * Dp * Dp         # W1, W2 (bf16)
                 + 2 * 4 * Dp              # biases
                 + 2 * 4 * Tc * Lp * Dp)   # double-buffered output chunk
    vmem_limit = int(min(48 * 2**20, max(2 * vmem_need, 4 * 2**20)))

    out = pl.pallas_call(
        functools.partial(_euler_self_kernel, tc=Tc),
        out_shape=jax.ShapeDtypeStruct((Tp, Lp, Dp), jnp.float32),
        grid_spec=pltpu.PrefetchScalarGridSpec(
            num_scalar_prefetch=0,
            grid=(Tp // Tc,),
            in_specs=[
                pl.BlockSpec(memory_space=pltpu.MemorySpace.SMEM),  # dts
                _const_block((Lp, Dp)),    # first_point
                _const_block((Dp, Dp)),    # W1 (bf16)
                _const_block((1, Dp)),     # b1
                _const_block((Dp, Dp)),    # W2 (bf16)
                _const_block((1, Dp)),     # b2
            ],
            out_specs=pl.BlockSpec((Tc, Lp, Dp), lambda c: (c, 0, 0)),
            scratch_shapes=[pltpu.VMEM((Lp, Dp), jnp.float32)],
        ),
        compiler_params=pltpu.CompilerParams(
            dimension_semantics=("arbitrary",),
            vmem_limit_bytes=vmem_limit),
    )(dts, fp, w1, b1, w2, b2)

    # odeint returns [T, L, D]; torch permutes to [L, T, D].
    return jnp.transpose(out[:T, :L, :D], (1, 0, 2))


@jax.jit
def euler_solve_mem(time_steps, first_point, w_in, b_in, memory_t, memory,
                    mem_mask, w_out, b_out):
    L, D = first_point.shape
    T = time_steps.shape[0]
    Lp = _round_up(L, 8)
    Dp = w_in.shape[0]
    Mp = memory.shape[0]
    Tc, Tp = _time_chunking(T)
    fp = jnp.pad(first_point.astype(jnp.float32), ((0, Lp - L), (0, Dp - D)))
    dts = _dts(time_steps, Tp)

    vmem_need = (2 * 4 * Lp * Dp           # first_point + z scratch (f32)
                 + 2 * 2 * Dp * Dp         # W_in, W_out (bf16)
                 + 2 * 2 * Mp * Dp         # memory, memory^T (bf16)
                 + 2 * 4 * Dp + 4 * Mp     # biases + mask
                 + 2 * 4 * Tc * Lp * Dp)   # double-buffered output chunk
    vmem_limit = int(min(48 * 2**20, max(2 * vmem_need, 4 * 2**20)))

    out = pl.pallas_call(
        functools.partial(_euler_mem_kernel, tc=Tc),
        out_shape=jax.ShapeDtypeStruct((Tp, Lp, Dp), jnp.float32),
        grid_spec=pltpu.PrefetchScalarGridSpec(
            num_scalar_prefetch=0,
            grid=(Tp // Tc,),
            in_specs=[
                pl.BlockSpec(memory_space=pltpu.MemorySpace.SMEM),  # dts
                _const_block((Lp, Dp)),    # first_point
                _const_block((Dp, Dp)),    # W_in (bf16)
                _const_block((1, Dp)),     # b_in
                _const_block((Dp, Mp)),    # memory^T (bf16, transposed on host)
                _const_block((Mp, Dp)),    # memory (bf16)
                _const_block((1, Mp)),     # additive softmax mask
                _const_block((Dp, Dp)),    # W_out (bf16)
                _const_block((1, Dp)),     # b_out
            ],
            out_specs=pl.BlockSpec((Tc, Lp, Dp), lambda c: (c, 0, 0)),
            scratch_shapes=[pltpu.VMEM((Lp, Dp), jnp.float32)],
        ),
        compiler_params=pltpu.CompilerParams(
            dimension_semantics=("arbitrary",),
            vmem_limit_bytes=vmem_limit),
    )(dts, fp, w_in, b_in, memory_t, memory, mem_mask, w_out, b_out)

    return jnp.transpose(out[:T, :L, :D], (1, 0, 2))


# -------------------------------- module port ------------------------------- #

class CasODEFuncPallas:
    """ODE right-hand side parameters (CasSelf / CasExternalMemory).

    Weights are zero-padded ONCE to 128-lane feature tiles (lane-dense MXU
    matmuls) and stored bf16; biases/masks stay f32.  Padded rows/columns are
    exact zeros and never leak into the valid [:, :D] region.
    """

    def __init__(self, input_dim, output_dim, external_memory, params, key):
        assert output_dim == input_dim, "ODE RHS must map state -> state"
        self.params = params
        self.input_dim = input_dim
        # TODO(synk): on v6e/v7x pad to multiples of 256 once input_dim > 128
        #             (256-wide MXU); 128 is already optimal for v5e and for
        #             the demo sizes.
        dp = _round_up(input_dim, 128)
        self.padded_dim = dp
        k1, k2, k3, k4 = jax.random.split(key, 4)
        s = 1.0 / jnp.sqrt(jnp.float32(input_dim))

        def pad2(a, r, c):
            return jnp.pad(a, ((0, r - a.shape[0]), (0, c - a.shape[1])))

        # CasSelf: 2-layer tanh MLP.
        w1 = jax.random.normal(k1, (input_dim, input_dim), jnp.float32) * s
        w2 = jax.random.normal(k2, (input_dim, output_dim), jnp.float32) * s
        self.w1 = pad2(w1, dp, dp).astype(jnp.bfloat16)
        self.b1 = jnp.zeros((1, dp), jnp.float32)
        self.w2 = pad2(w2, dp, dp).astype(jnp.bfloat16)
        self.b2 = jnp.zeros((1, dp), jnp.float32)

        # CasExternalMemory: tanh projection + softmax read over memory.
        hidden = input_dim
        w_in = jax.random.normal(k3, (input_dim, hidden), jnp.float32) * s
        w_out = jax.random.normal(k4, (hidden, output_dim), jnp.float32) * s
        self.w_in = pad2(w_in, dp, dp).astype(jnp.bfloat16)
        self.b_in = jnp.zeros((1, dp), jnp.float32)
        self.w_out = pad2(w_out, dp, dp).astype(jnp.bfloat16)
        self.b_out = jnp.zeros((1, dp), jnp.float32)

        m = external_memory.shape[0]
        mp = _round_up(m, 128)               # lane-dense memory-slot axis
        self.n_slots = m
        mem = pad2(external_memory.astype(jnp.float32), mp, dp)
        self.memory = mem.astype(jnp.bfloat16)            # [Mp, Dp]
        self.memory_t = jnp.transpose(self.memory)        # [Dp, Mp] (once, host)
        # Additive pre-softmax mask: 0 on real slots, -1e30 on padded slots.
        self.mem_mask = jnp.where(jnp.arange(mp)[None, :] < m,
                                  0.0, -1e30).astype(jnp.float32)


class DiffeqSolverPallas:
    """Pallas port of DiffeqSolver (forward only, fixed-step Euler odeint)."""

    def __init__(self, ode_func, method="euler", odeint_rtol=1e-3,
                 odeint_atol=1e-4):
        # TODO(synk): only the fixed-step 'euler' method is implemented;
        #             adaptive methods using rtol/atol are not supported.
        if method != "euler":
            raise NotImplementedError("only method='euler' is supported")
        self.ode_func = ode_func
        self.odeint_rtol = odeint_rtol
        self.odeint_atol = odeint_atol

    def __call__(self, first_point, time_steps_to_predict):
        f = self.ode_func
        if f.params["self_evolution"]:
            return euler_solve_self(time_steps_to_predict, first_point,
                                    f.w1, f.b1, f.w2, f.b2)
        return euler_solve_mem(time_steps_to_predict, first_point,
                               f.w_in, f.b_in, f.memory_t, f.memory,
                               f.mem_mask, f.w_out, f.b_out)


# ----------------------------------- main ----------------------------------- #

if __name__ == "__main__":
    key = jax.random.PRNGKey(0)
    k_z, k_mem, k_param = jax.random.split(key, 3)

    # z state: [K*N + K*N*N, D] with K=2, N=4, D=32  ->  [40, 32]
    K, N, D = 2, 4, 32
    L = K * N + K * N * N
    T = 8                                   # time steps to predict
    M = 8                                   # external memory slots

    first_point = jax.random.normal(k_z, (L, D), jnp.float32)
    time_steps = jnp.linspace(0.0, 0.7, T, dtype=jnp.float32)
    external_memory = jax.random.normal(k_mem, (M, D), jnp.float32)

    ode_self = CasODEFuncPallas(D, D, external_memory,
                                {"self_evolution": True}, k_param)
    ode_mem = CasODEFuncPallas(D, D, external_memory,
                               {"self_evolution": False}, k_param)

    solver_self = DiffeqSolverPallas(ode_self, method="euler")
    solver_mem = DiffeqSolverPallas(ode_mem, method="euler")

    pred_self = solver_self(first_point, time_steps)
    pred_mem = solver_mem(first_point, time_steps)
    jax.block_until_ready(pred_self)
    jax.block_until_ready(pred_mem)

    assert pred_self.shape == (L, T, D)
    assert pred_mem.shape == (L, T, D)
    assert not bool(jnp.isnan(pred_self).any())
    assert not bool(jnp.isnan(pred_mem).any())

    # Initial condition: pred_y[:, 0, :] == first_point (dt_0 = 0 => exact).
    assert bool(jnp.allclose(pred_self[:, 0, :], first_point, atol=1e-6))
    assert bool(jnp.allclose(pred_mem[:, 0, :], first_point, atol=1e-6))

    # Pure-JAX Euler references using the same bf16-in / f32-accumulate dots.
    bf = jnp.bfloat16
    w1v, w2v = ode_self.w1[:D, :D], ode_self.w2[:D, :D]
    w_inv, w_outv = ode_mem.w_in[:D, :D], ode_mem.w_out[:D, :D]
    memv = ode_mem.memory[:M, :D]

    def rhs_self(z):
        h = jnp.tanh(jnp.dot(z.astype(bf), w1v,
                             preferred_element_type=jnp.float32))
        return jnp.dot(h.astype(bf), w2v, preferred_element_type=jnp.float32)

    def rhs_mem(z):
        h = jnp.tanh(jnp.dot(z.astype(bf), w_inv,
                             preferred_element_type=jnp.float32))
        s = jnp.dot(h.astype(bf), memv.T, preferred_element_type=jnp.float32)
        a = jax.nn.softmax(s, axis=-1)
        r = jnp.dot(a.astype(bf), memv, preferred_element_type=jnp.float32)
        return jnp.dot(r.astype(bf), w_outv, preferred_element_type=jnp.float32)

    def euler_ref(rhs):
        z = first_point
        traj = [z]
        for i in range(1, T):
            z = z + (time_steps[i] - time_steps[i - 1]) * rhs(z)
            traj.append(z)
        return jnp.transpose(jnp.stack(traj, axis=0), (1, 0, 2))

    assert bool(jnp.allclose(pred_self, euler_ref(rhs_self),
                             rtol=1e-2, atol=1e-2))
    # approx reciprocal in the kernel softmax => slightly looser tolerance.
    assert bool(jnp.allclose(pred_mem, euler_ref(rhs_mem),
                             rtol=2e-2, atol=2e-2))

    print("KERNEL_OK")
</pallas_src>

<mosaic_0001>
module attributes {stable_mosaic.version = 11 : i64} {
  func.func @_euler_self_kernel(%arg0: i32, %arg1: memref<8xf32, #tpu.memory_space<smem>>, %arg2: memref<40x128xf32, #tpu.memory_space<vmem>>, %arg3: memref<128x128xbf16, #tpu.memory_space<vmem>>, %arg4: memref<1x128xf32, #tpu.memory_space<vmem>>, %arg5: memref<128x128xbf16, #tpu.memory_space<vmem>>, %arg6: memref<1x128xf32, #tpu.memory_space<vmem>>, %arg7: memref<8x40x128xf32, #tpu.memory_space<vmem>>, %arg8: memref<40x128xf32, #tpu.memory_space<vmem>>) attributes {dimension_semantics = [#tpu.dimension_semantics<arbitrary>], iteration_bounds = array<i64: 1>, scalar_prefetch = 0 : i64, scratch_operands = 1 : i64, tpu.core_type = #tpu.core_type<tc>, window_params = [{transform_indices = @transform_0, window_bounds = array<i64: 8>}, {pipeline_mode = #tpu.pipeline_mode<synchronous>, transform_indices = @transform_1, window_bounds = array<i64: 40, 128>}, {pipeline_mode = #tpu.pipeline_mode<synchronous>, transform_indices = @transform_2, window_bounds = array<i64: 128, 128>}, {pipeline_mode = #tpu.pipeline_mode<synchronous>, transform_indices = @transform_3, window_bounds = array<i64: 1, 128>}, {pipeline_mode = #tpu.pipeline_mode<synchronous>, transform_indices = @transform_4, window_bounds = array<i64: 128, 128>}, {pipeline_mode = #tpu.pipeline_mode<synchronous>, transform_indices = @transform_5, window_bounds = array<i64: 1, 128>}, {transform_indices = @transform_6, window_bounds = array<i64: 8, 40, 128>}]} {
    %c0_i32 = arith.constant 0 : i32
    %0 = arith.cmpi eq, %arg0, %c0_i32 : i32
    %1 = arith.extui %0 : i1 to i32
    %c0_i32_0 = arith.constant 0 : i32
    %2 = arith.cmpi ne, %1, %c0_i32_0 : i32
    scf.if %2 {
      %c0_45 = arith.constant 0 : index
      %c0_46 = arith.constant 0 : index
      %142 = vector.load %arg2[%c0_45, %c0_46] : memref<40x128xf32, #tpu.memory_space<vmem>>, vector<40x128xf32>
      %c0_47 = arith.constant 0 : index
      %c0_48 = arith.constant 0 : index
      %143 = vector.load %arg8[%c0_47, %c0_48] : memref<40x128xf32, #tpu.memory_space<vmem>>, vector<40x128xf32>
      tpu.vector_store %arg8[%c0_47, %c0_48], %142 {strides = array<i32>} : memref<40x128xf32, #tpu.memory_space<vmem>>, vector<40x128xf32>,
    } else {
    }
    %c0 = arith.constant 0 : index
    %c0_1 = arith.constant 0 : index
    %3 = vector.load %arg3[%c0, %c0_1] : memref<128x128xbf16, #tpu.memory_space<vmem>>, vector<128x128xbf16>
    %c0_2 = arith.constant 0 : index
    %c0_3 = arith.constant 0 : index
    %4 = vector.load %arg5[%c0_2, %c0_3] : memref<128x128xbf16, #tpu.memory_space<vmem>>, vector<128x128xbf16>
    %c0_4 = arith.constant 0 : index
    %c0_5 = arith.constant 0 : index
    %5 = vector.load %arg4[%c0_4, %c0_5] : memref<1x128xf32, #tpu.memory_space<vmem>>, vector<1x128xf32>
    %6 = vector.shape_cast %5 : vector<1x128xf32> to vector<1x128xf32>
    %7 = vector.broadcast %6 : vector<1x128xf32> to vector<40x128xf32>
    %c0_6 = arith.constant 0 : index
    %c0_7 = arith.constant 0 : index
    %8 = vector.load %arg6[%c0_6, %c0_7] : memref<1x128xf32, #tpu.memory_space<vmem>>, vector<1x128xf32>
    %9 = vector.shape_cast %8 : vector<1x128xf32> to vector<1x128xf32>
    %10 = vector.broadcast %9 : vector<1x128xf32> to vector<40x128xf32>
    %c0_8 = arith.constant 0 : index
    %c0_9 = arith.constant 0 : index
    %11 = vector.load %arg8[%c0_8, %c0_9] : memref<40x128xf32, #tpu.memory_space<vmem>>, vector<40x128xf32>
    %c8_i32 = arith.constant 8 : i32
    %12 = arith.muli %arg0, %c8_i32 : i32
    %c0_i32_10 = arith.constant 0 : i32
    %13 = arith.addi %12, %c0_i32_10 : i32
    %14 = arith.index_cast %13 : i32 to index
    %15 = memref.load %arg1[%14] : memref<8xf32, #tpu.memory_space<smem>>
    %16 = arith.truncf %11 : vector<40x128xf32> to vector<40x128xbf16>
    %cst = arith.constant dense<0.000000e+00> : vector<40x128xf32>
    %17 = tpu.matmul %16, %3, %cst {dimension_numbers = #tpu.dot_dimension_numbers<[1], [0], [0], [1], [0, 0, 1, 1], [], []>} : vector<40x128xbf16>, vector<128x128xbf16>, vector<40x128xf32> -> vector<40x128xf32>
    %18 = arith.addf %17, %7 : vector<40x128xf32>
    %19 = math.tanh %18 : vector<40x128xf32>
    %20 = arith.truncf %19 : vector<40x128xf32> to vector<40x128xbf16>
    %cst_11 = arith.constant dense<0.000000e+00> : vector<40x128xf32>
    %21 = tpu.matmul %20, %4, %cst_11 {dimension_numbers = #tpu.dot_dimension_numbers<[1], [0], [0], [1], [0, 0, 1, 1], [], []>} : vector<40x128xbf16>, vector<128x128xbf16>, vector<40x128xf32> -> vector<40x128xf32>
    %22 = arith.addf %21, %10 : vector<40x128xf32>
    %23 = vector.broadcast %15 : f32 to vector<40x128xf32>
    %24 = arith.mulf %23, %22 : vector<40x128xf32>
    %25 = arith.addf %11, %24 : vector<40x128xf32>
    %c0_12 = arith.constant 0 : index
    %c0_13 = arith.constant 0 : index
    %c0_14 = arith.constant 0 : index
    %26 = vector.load %arg7[%c0_12, %c0_13, %c0_14] : memref<8x40x128xf32, #tpu.memory_space<vmem>>, vector<1x40x128xf32>
    %27 = vector.shape_cast %26 : vector<1x40x128xf32> to vector<40x128xf32>
    %28 = vector.shape_cast %25 : vector<40x128xf32> to vector<1x40x128xf32>
    tpu.vector_store %arg7[%c0_12, %c0_13, %c0_14], %28 {strides = array<i32>} : memref<8x40x128xf32, #tpu.memory_space<vmem>>, vector<1x40x128xf32>,
    %c1_i32 = arith.constant 1 : i32
    %29 = arith.addi %12, %c1_i32 : i32
    %30 = arith.index_cast %29 : i32 to index
    %31 = memref.load %arg1[%30] : memref<8xf32, #tpu.memory_space<smem>>
    %32 = arith.truncf %25 : vector<40x128xf32> to vector<40x128xbf16>
    %cst_15 = arith.constant dense<0.000000e+00> : vector<40x128xf32>
    %33 = tpu.matmul %32, %3, %cst_15 {dimension_numbers = #tpu.dot_dimension_numbers<[1], [0], [0], [1], [0, 0, 1, 1], [], []>} : vector<40x128xbf16>, vector<128x128xbf16>, vector<40x128xf32> -> vector<40x128xf32>
    %34 = arith.addf %33, %7 : vector<40x128xf32>
    %35 = math.tanh %34 : vector<40x128xf32>
    %36 = arith.truncf %35 : vector<40x128xf32> to vector<40x128xbf16>
    %cst_16 = arith.constant dense<0.000000e+00> : vector<40x128xf32>
    %37 = tpu.matmul %36, %4, %cst_16 {dimension_numbers = #tpu.dot_dimension_numbers<[1], [0], [0], [1], [0, 0, 1, 1], [], []>} : vector<40x128xbf16>, vector<128x128xbf16>, vector<40x128xf32> -> vector<40x128xf32>
    %38 = arith.addf %37, %10 : vector<40x128xf32>
    %39 = vector.broadcast %31 : f32 to vector<40x128xf32>
    %40 = arith.mulf %39, %38 : vector<40x128xf32>
    %41 = arith.addf %25, %40 : vector<40x128xf32>
    %c1 = arith.constant 1 : index
    %c0_17 = arith.constant 0 : index
    %c0_18 = arith.constant 0 : index
    %42 = vector.load %arg7[%c1, %c0_17, %c0_18] : memref<8x40x128xf32, #tpu.memory_space<vmem>>, vector<1x40x128xf32>
    %43 = vector.shape_cast %42 : vector<1x40x128xf32> to vector<40x128xf32>
    %44 = vector.shape_cast %41 : vector<40x128xf32> to vector<1x40x128xf32>
    tpu.vector_store %arg7[%c1, %c0_17, %c0_18], %44 {strides = array<i32>} : memref<8x40x128xf32, #tpu.memory_space<vmem>>, vector<1x40x128xf32>,
    %c2_i32 = arith.constant 2 : i32
    %45 = arith.addi %12, %c2_i32 : i32
    %46 = arith.index_cast %45 : i32 to index
    %47 = memref.load %arg1[%46] : memref<8xf32, #tpu.memory_space<smem>>
    %48 = arith.truncf %41 : vector<40x128xf32> to vector<40x128xbf16>
    %cst_19 = arith.constant dense<0.000000e+00> : vector<40x128xf32>
    %49 = tpu.matmul %48, %3, %cst_19 {dimension_numbers = #tpu.dot_dimension_numbers<[1], [0], [0], [1], [0, 0, 1, 1], [], []>} : vector<40x128xbf16>, vector<128x128xbf16>, vector<40x128xf32> -> vector<40x128xf32>
    %50 = arith.addf %49, %7 : vector<40x128xf32>
    %51 = math.tanh %50 : vector<40x128xf32>
    %52 = arith.truncf %51 : vector<40x128xf32> to vector<40x128xbf16>
    %cst_20 = arith.constant dense<0.000000e+00> : vector<40x128xf32>
    %53 = tpu.matmul %52, %4, %cst_20 {dimension_numbers = #tpu.dot_dimension_numbers<[1], [0], [0], [1], [0, 0, 1, 1], [], []>} : vector<40x128xbf16>, vector<128x128xbf16>, vector<40x128xf32> -> vector<40x128xf32>
    %54 = arith.addf %53, %10 : vector<40x128xf32>
    %55 = vector.broadcast %47 : f32 to vector<40x128xf32>
    %56 = arith.mulf %55, %54 : vector<40x128xf32>
    %57 = arith.addf %41, %56 : vector<40x128xf32>
    %c2 = arith.constant 2 : index
    %c0_21 = arith.constant 0 : index
    %c0_22 = arith.constant 0 : index
    %58 = vector.load %arg7[%c2, %c0_21, %c0_22] : memref<8x40x128xf32, #tpu.memory_space<vmem>>, vector<1x40x128xf32>
    %59 = vector.shape_cast %58 : vector<1x40x128xf32> to vector<40x128xf32>
    %60 = vector.shape_cast %57 : vector<40x128xf32> to vector<1x40x128xf32>
    tpu.vector_store %arg7[%c2, %c0_21, %c0_22], %60 {strides = array<i32>} : memref<8x40x128xf32, #tpu.memory_space<vmem>>, vector<1x40x128xf32>,
    %c3_i32 = arith.constant 3 : i32
    %61 = arith.addi %12, %c3_i32 : i32
    %62 = arith.index_cast %61 : i32 to index
    %63 = memref.load %arg1[%62] : memref<8xf32, #tpu.memory_space<smem>>
    %64 = arith.truncf %57 : vector<40x128xf32> to vector<40x128xbf16>
    %cst_23 = arith.constant dense<0.000000e+00> : vector<40x128xf32>
    %65 = tpu.matmul %64, %3, %cst_23 {dimension_numbers = #tpu.dot_dimension_numbers<[1], [0], [0], [1], [0, 0, 1, 1], [], []>} : vector<40x128xbf16>, vector<128x128xbf16>, vector<40x128xf32> -> vector<40x128xf32>
    %66 = arith.addf %65, %7 : vector<40x128xf32>
    %67 = math.tanh %66 : vector<40x128xf32>
    %68 = arith.truncf %67 : vector<40x128xf32> to vector<40x128xbf16>
    %cst_24 = arith.constant dense<0.000000e+00> : vector<40x128xf32>
    %69 = tpu.matmul %68, %4, %cst_24 {dimension_numbers = #tpu.dot_dimension_numbers<[1], [0], [0], [1], [0, 0, 1, 1], [], []>} : vector<40x128xbf16>, vector<128x128xbf16>, vector<40x128xf32> -> vector<40x128xf32>
    %70 = arith.addf %69, %10 : vector<40x128xf32>
    %71 = vector.broadcast %63 : f32 to vector<40x128xf32>
    %72 = arith.mulf %71, %70 : vector<40x128xf32>
    %73 = arith.addf %57, %72 : vector<40x128xf32>
    %c3 = arith.constant 3 : index
    %c0_25 = arith.constant 0 : index
    %c0_26 = arith.constant 0 : index
    %74 = vector.load %arg7[%c3, %c0_25, %c0_26] : memref<8x40x128xf32, #tpu.memory_space<vmem>>, vector<1x40x128xf32>
    %75 = vector.shape_cast %74 : vector<1x40x128xf32> to vector<40x128xf32>
    %76 = vector.shape_cast %73 : vector<40x128xf32> to vector<1x40x128xf32>
    tpu.vector_store %arg7[%c3, %c0_25, %c0_26], %76 {strides = array<i32>} : memref<8x40x128xf32, #tpu.memory_space<vmem>>, vector<1x40x128xf32>,
    %c4_i32 = arith.constant 4 : i32
    %77 = arith.addi %12, %c4_i32 : i32
    %78 = arith.index_cast %77 : i32 to index
    %79 = memref.load %arg1[%78] : memref<8xf32, #tpu.memory_space<smem>>
    %80 = arith.truncf %73 : vector<40x128xf32> to vector<40x128xbf16>
    %cst_27 = arith.constant dense<0.000000e+00> : vector<40x128xf32>
    %81 = tpu.matmul %80, %3, %cst_27 {dimension_numbers = #tpu.dot_dimension_numbers<[1], [0], [0], [1], [0, 0, 1, 1], [], []>} : vector<40x128xbf16>, vector<128x128xbf16>, vector<40x128xf32> -> vector<40x128xf32>
    %82 = arith.addf %81, %7 : vector<40x128xf32>
    %83 = math.tanh %82 : vector<40x128xf32>
    %84 = arith.truncf %83 : vector<40x128xf32> to vector<40x128xbf16>
    %cst_28 = arith.constant dense<0.000000e+00> : vector<40x128xf32>
    %85 = tpu.matmul %84, %4, %cst_28 {dimension_numbers = #tpu.dot_dimension_numbers<[1], [0], [0], [1], [0, 0, 1, 1], [], []>} : vector<40x128xbf16>, vector<128x128xbf16>, vector<40x128xf32> -> vector<40x128xf32>
    %86 = arith.addf %85, %10 : vector<40x128xf32>
    %87 = vector.broadcast %79 : f32 to vector<40x128xf32>
    %88 = arith.mulf %87, %86 : vector<40x128xf32>
    %89 = arith.addf %73, %88 : vector<40x128xf32>
    %c4 = arith.constant 4 : index
    %c0_29 = arith.constant 0 : index
    %c0_30 = arith.constant 0 : index
    %90 = vector.load %arg7[%c4, %c0_29, %c0_30] : memref<8x40x128xf32, #tpu.memory_space<vmem>>, vector<1x40x128xf32>
    %91 = vector.shape_cast %90 : vector<1x40x128xf32> to vector<40x128xf32>
    %92 = vector.shape_cast %89 : vector<40x128xf32> to vector<1x40x128xf32>
    tpu.vector_store %arg7[%c4, %c0_29, %c0_30], %92 {strides = array<i32>} : memref<8x40x128xf32, #tpu.memory_space<vmem>>, vector<1x40x128xf32>,
    %c5_i32 = arith.constant 5 : i32
    %93 = arith.addi %12, %c5_i32 : i32
    %94 = arith.index_cast %93 : i32 to index
    %95 = memref.load %arg1[%94] : memref<8xf32, #tpu.memory_space<smem>>
    %96 = arith.truncf %89 : vector<40x128xf32> to vector<40x128xbf16>
    %cst_31 = arith.constant dense<0.000000e+00> : vector<40x128xf32>
    %97 = tpu.matmul %96, %3, %cst_31 {dimension_numbers = #tpu.dot_dimension_numbers<[1], [0], [0], [1], [0, 0, 1, 1], [], []>} : vector<40x128xbf16>, vector<128x128xbf16>, vector<40x128xf32> -> vector<40x128xf32>
    %98 = arith.addf %97, %7 : vector<40x128xf32>
    %99 = math.tanh %98 : vector<40x128xf32>
    %100 = arith.truncf %99 : vector<40x128xf32> to vector<40x128xbf16>
    %cst_32 = arith.constant dense<0.000000e+00> : vector<40x128xf32>
    %101 = tpu.matmul %100, %4, %cst_32 {dimension_numbers = #tpu.dot_dimension_numbers<[1], [0], [0], [1], [0, 0, 1, 1], [], []>} : vector<40x128xbf16>, vector<128x128xbf16>, vector<40x128xf32> -> vector<40x128xf32>
    %102 = arith.addf %101, %10 : vector<40x128xf32>
    %103 = vector.broadcast %95 : f32 to vector<40x128xf32>
    %104 = arith.mulf %103, %102 : vector<40x128xf32>
    %105 = arith.addf %89, %104 : vector<40x128xf32>
    %c5 = arith.constant 5 : index
    %c0_33 = arith.constant 0 : index
    %c0_34 = arith.constant 0 : index
    %106 = vector.load %arg7[%c5, %c0_33, %c0_34] : memref<8x40x128xf32, #tpu.memory_space<vmem>>, vector<1x40x128xf32>
    %107 = vector.shape_cast %106 : vector<1x40x128xf32> to vector<40x128xf32>
    %108 = vector.shape_cast %105 : vector<40x128xf32> to vector<1x40x128xf32>
    tpu.vector_store %arg7[%c5, %c0_33, %c0_34], %108 {strides = array<i32>} : memref<8x40x128xf32, #tpu.memory_space<vmem>>, vector<1x40x128xf32>,
    %c6_i32 = arith.constant 6 : i32
    %109 = arith.addi %12, %c6_i32 : i32
    %110 = arith.index_cast %109 : i32 to index
    %111 = memref.load %arg1[%110] : memref<8xf32, #tpu.memory_space<smem>>
    %112 = arith.truncf %105 : vector<40x128xf32> to vector<40x128xbf16>
    %cst_35 = arith.constant dense<0.000000e+00> : vector<40x128xf32>
    %113 = tpu.matmul %112, %3, %cst_35 {dimension_numbers = #tpu.dot_dimension_numbers<[1], [0], [0], [1], [0, 0, 1, 1], [], []>} : vector<40x128xbf16>, vector<128x128xbf16>, vector<40x128xf32> -> vector<40x128xf32>
    %114 = arith.addf %113, %7 : vector<40x128xf32>
    %115 = math.tanh %114 : vector<40x128xf32>
    %116 = arith.truncf %115 : vector<40x128xf32> to vector<40x128xbf16>
    %cst_36 = arith.constant dense<0.000000e+00> : vector<40x128xf32>
    %117 = tpu.matmul %116, %4, %cst_36 {dimension_numbers = #tpu.dot_dimension_numbers<[1], [0], [0], [1], [0, 0, 1, 1], [], []>} : vector<40x128xbf16>, vector<128x128xbf16>, vector<40x128xf32> -> vector<40x128xf32>
    %118 = arith.addf %117, %10 : vector<40x128xf32>
    %119 = vector.broadcast %111 : f32 to vector<40x128xf32>
    %120 = arith.mulf %119, %118 : vector<40x128xf32>
    %121 = arith.addf %105, %120 : vector<40x128xf32>
    %c6 = arith.constant 6 : index
    %c0_37 = arith.constant 0 : index
    %c0_38 = arith.constant 0 : index
    %122 = vector.load %arg7[%c6, %c0_37, %c0_38] : memref<8x40x128xf32, #tpu.memory_space<vmem>>, vector<1x40x128xf32>
    %123 = vector.shape_cast %122 : vector<1x40x128xf32> to vector<40x128xf32>
    %124 = vector.shape_cast %121 : vector<40x128xf32> to vector<1x40x128xf32>
    tpu.vector_store %arg7[%c6, %c0_37, %c0_38], %124 {strides = array<i32>} : memref<8x40x128xf32, #tpu.memory_space<vmem>>, vector<1x40x128xf32>,
    %c7_i32 = arith.constant 7 : i32
    %125 = arith.addi %12, %c7_i32 : i32
    %126 = arith.index_cast %125 : i32 to index
    %127 = memref.load %arg1[%126] : memref<8xf32, #tpu.memory_space<smem>>
    %128 = arith.truncf %121 : vector<40x128xf32> to vector<40x128xbf16>
    %cst_39 = arith.constant dense<0.000000e+00> : vector<40x128xf32>
    %129 = tpu.matmul %128, %3, %cst_39 {dimension_numbers = #tpu.dot_dimension_numbers<[1], [0], [0], [1], [0, 0, 1, 1], [], []>} : vector<40x128xbf16>, vector<128x128xbf16>, vector<40x128xf32> -> vector<40x128xf32>
    %130 = arith.addf %129, %7 : vector<40x128xf32>
    %131 = math.tanh %130 : vector<40x128xf32>
    %132 = arith.truncf %131 : vector<40x128xf32> to vector<40x128xbf16>
    %cst_40 = arith.constant dense<0.000000e+00> : vector<40x128xf32>
    %133 = tpu.matmul %132, %4, %cst_40 {dimension_numbers = #tpu.dot_dimension_numbers<[1], [0], [0], [1], [0, 0, 1, 1], [], []>} : vector<40x128xbf16>, vector<128x128xbf16>, vector<40x128xf32> -> vector<40x128xf32>
    %134 = arith.addf %133, %10 : vector<40x128xf32>
    %135 = vector.broadcast %127 : f32 to vector<40x128xf32>
    %136 = arith.mulf %135, %134 : vector<40x128xf32>
    %137 = arith.addf %121, %136 : vector<40x128xf32>
    %c7 = arith.constant 7 : index
    %c0_41 = arith.constant 0 : index
    %c0_42 = arith.constant 0 : index
    %138 = vector.load %arg7[%c7, %c0_41, %c0_42] : memref<8x40x128xf32, #tpu.memory_space<vmem>>, vector<1x40x128xf32>
    %139 = vector.shape_cast %138 : vector<1x40x128xf32> to vector<40x128xf32>
    %140 = vector.shape_cast %137 : vector<40x128xf32> to vector<1x40x128xf32>
    tpu.vector_store %arg7[%c7, %c0_41, %c0_42], %140 {strides = array<i32>} : memref<8x40x128xf32, #tpu.memory_space<vmem>>, vector<1x40x128xf32>,
    %c0_43 = arith.constant 0 : index
    %c0_44 = arith.constant 0 : index
    %141 = vector.load %arg8[%c0_43, %c0_44] : memref<40x128xf32, #tpu.memory_space<vmem>>, vector<40x128xf32>
    tpu.vector_store %arg8[%c0_43, %c0_44], %137 {strides = array<i32>} : memref<40x128xf32, #tpu.memory_space<vmem>>, vector<40x128xf32>,
    return
  }
  func.func @transform_0(%arg0: i32) -> i32 {
    %c0_i32 = arith.constant 0 : i32
    %c0_i32_0 = arith.constant 0 : i32
    return %c0_i32 : i32
  }
  func.func @transform_1(%arg0: i32) -> (i32, i32) {
    %c0_i32 = arith.constant 0 : i32
    %c0_i32_0 = arith.constant 0 : i32
    %c0_i32_1 = arith.constant 0 : i32
    return %c0_i32, %c0_i32_0 : i32, i32
  }
  func.func @transform_2(%arg0: i32) -> (i32, i32) {
    %c0_i32 = arith.constant 0 : i32
    %c0_i32_0 = arith.constant 0 : i32
    %c0_i32_1 = arith.constant 0 : i32
    return %c0_i32, %c0_i32_0 : i32, i32
  }
  func.func @transform_3(%arg0: i32) -> (i32, i32) {
    %c0_i32 = arith.constant 0 : i32
    %c0_i32_0 = arith.constant 0 : i32
    %c0_i32_1 = arith.constant 0 : i32
    return %c0_i32, %c0_i32_0 : i32, i32
  }
  func.func @transform_4(%arg0: i32) -> (i32, i32) {
    %c0_i32 = arith.constant 0 : i32
    %c0_i32_0 = arith.constant 0 : i32
    %c0_i32_1 = arith.constant 0 : i32
    return %c0_i32, %c0_i32_0 : i32, i32
  }
  func.func @transform_5(%arg0: i32) -> (i32, i32) {
    %c0_i32 = arith.constant 0 : i32
    %c0_i32_0 = arith.constant 0 : i32
    %c0_i32_1 = arith.constant 0 : i32
    return %c0_i32, %c0_i32_0 : i32, i32
  }
  func.func @transform_6(%arg0: i32) -> (i32, i32, i32) {
    %c0_i32 = arith.constant 0 : i32
    %c0_i32_0 = arith.constant 0 : i32
    %c0_i32_1 = arith.constant 0 : i32
    return %arg0, %c0_i32, %c0_i32_0 : i32, i32, i32
  }
}

</mosaic_0001>

<llo_original>
// kernel: euler_solve_self.1
$region0: #{euler_solve_self.1}
  #allocation0 [shape = 'u32[]', space=smem, size = 0x4, offset = 0x4, fixed_abs, tag = 'smem constant byte address 0x4 - core index']
  #allocation1 [shape = 'u32[72,128]{1,0:T(1,128)}', space=vmem, size = 0x9000, scoped, tag = 'internal scratch']
  #allocation2 [shape = 'f32[40,128]{1,0:T(8,128)}', space=vmem, size = 0x5000, scoped, tag = 'scratch operand']
  %s0 = inlined_call_operand.vmem [shape: f32[8], index: 0, kind: input, shape index: {}]
  %s1 = inlined_call_operand.vmem [shape: f32[40,128], index: 1, kind: input, shape index: {}]
  %s2 = inlined_call_operand.vmem [shape: bf16[128,128], index: 2, kind: input, shape index: {}]
  %s3 = inlined_call_operand.vmem [shape: f32[1,128], index: 3, kind: input, shape index: {}]
  %s4 = inlined_call_operand.vmem [shape: bf16[128,128], index: 4, kind: input, shape index: {}]
  %s5 = inlined_call_operand.vmem [shape: f32[1,128], index: 5, kind: input, shape index: {}]
  %s6 = inlined_call_operand.vmem [shape: f32[8,40,128], index: 6, kind: output, shape index: {}]
  %s7 = sld [smem:[#allocation0]]
  $region42: #{euler_solve_self.1} parent=0
    _
  %s9 = ssub.s32 1, %s7
  %s10 = scalar_select 0, %s9, %s7
  $region1: #{euler_solve_self.1} parent=0
    #allocation3 [shape = 'u8[512]{0}', space=smem, size = 0x200, scoped, tag = 'input window, operand 0, single buffered']
    #allocation4 [shape = 's32[1]{0}', space=sflag, size = 0x4, scoped, tag = 'scoped memory for euler_solve_self.1']
    %11 = vsyncpa [#allocation4], 0
    // Predicated region
    $region2: #{euler_solve_self.1} parent=1 // pred_check
      _
    $region3: #{euler_solve_self.1} parent=1 // pred_check_branch
      %13 = sbr.rel (0) target = $region5
    $region4: #{euler_solve_self.1} parent=1 // pred_region
      %15 = vsyncadd [#allocation4], 0
      %s17 = sshll.u32 %s0, 4
      %s18 = int_to_ptr.vmem [resolvable:$true] %s17
      %20 = dma.vmem_to_smem %s18, 16, [#allocation3], [#allocation4]
    $region5: #{euler_solve_self.1} parent=1 // pred_fallthru
      _
    // Predicated region
    $region6: #{euler_solve_self.1} parent=1 // pred_check
      _
    $region7: #{euler_solve_self.1} parent=1 // pred_check_branch
      %22 = sbr.rel (0) target = $region9
    $region8: #{euler_solve_self.1} parent=1 // pred_region
      _
    $region9: #{euler_solve_self.1} parent=1 // pred_fallthru
      _
    // Predicated region
    $region10: #{euler_solve_self.1} parent=1 // pred_check
      _
    $region11: #{euler_solve_self.1} parent=1 // pred_check_branch
      %24 = sbr.rel (0) target = $region13
    $region12: #{euler_solve_self.1} parent=1 // pred_region
      _
    $region13: #{euler_solve_self.1} parent=1 // pred_fallthru
      _
    // Predicated region
    $region14: #{euler_solve_self.1} parent=1 // pred_check
      _
    $region15: #{euler_solve_self.1} parent=1 // pred_check_branch
      %26 = sbr.rel (0) target = $region17
    $region16: #{euler_solve_self.1} parent=1 // pred_region
      _
    $region17: #{euler_solve_self.1} parent=1 // pred_fallthru
      _
    // Predicated region
    $region18: #{euler_solve_self.1} parent=1 // pred_check
      _
    $region19: #{euler_solve_self.1} parent=1 // pred_check_branch
      %28 = sbr.rel (0) target = $region21
    $region20: #{euler_solve_self.1} parent=1 // pred_region
      _
    $region21: #{euler_solve_self.1} parent=1 // pred_fallthru
      _
    // Predicated region
    $region22: #{euler_solve_self.1} parent=1 // pred_check
      _
    $region23: #{euler_solve_self.1} parent=1 // pred_check_branch
      %30 = sbr.rel (0) target = $region25
    $region24: #{euler_solve_self.1} parent=1 // pred_region
      _
    $region25: #{euler_solve_self.1} parent=1 // pred_fallthru
      _
    // Predicated region
    $region26: #{euler_solve_self.1} parent=1 // pred_check
      _
    $region27: #{euler_solve_self.1} parent=1 // pred_check_branch
      %32 = sbr.rel (0) target = $region29
    $region28: #{euler_solve_self.1} parent=1 // pred_region
      %34 = dma.done [#allocation4], 16
    $region29: #{euler_solve_self.1} parent=1 // pred_fallthru
      _
    %35 = sfence
    %p36 = scmp.eq.s32.totalorder 0, 0
    // Predicated region
    $region30: #{euler_solve_self.1} parent=1 // pred_check
      %p37 = pneg %p36
    $region31: #{euler_solve_self.1} parent=1 // pred_check_branch
      %39 = sbr.rel (%p37) target = $region33
    $region32: #{euler_solve_self.1} parent=1 // pred_region
      %v40 = vld [vmem:[%s1] sm:$0xff]
      %v41 = vld [vmem:[%s1 + $0x8] sm:$0xff]
      %v42 = vld [vmem:[%s1 + $0x10] sm:$0xff]
      %v43 = vld [vmem:[%s1 + $0x18] sm:$0xff]
      %v44 = vld [vmem:[%s1 + $0x20] sm:$0xff]
      %45 = vst [vmem:[#allocation2] sm:$0xff] %v40
      %46 = vst [vmem:[#allocation2 + $0x8] sm:$0xff] %v41
      %47 = vst [vmem:[#allocation2 + $0x10] sm:$0xff] %v42
      %48 = vst [vmem:[#allocation2 + $0x18] sm:$0xff] %v43
      %49 = vst [vmem:[#allocation2 + $0x20] sm:$0xff] %v44
    $region33: #{euler_solve_self.1} parent=1 // pred_fallthru
      _
    %v50 = vld [vmem:[%s2] sm:$0xf]
    %v51 = vld [vmem:[%s2 + $0x4] sm:$0xf]
    %v52 = vld [vmem:[%s2 + $0x8] sm:$0xf]
    %v53 = vld [vmem:[%s2 + $0xc] sm:$0xf]
    %v54 = vld [vmem:[%s2 + $0x10] sm:$0xf]
    %v55 = vld [vmem:[%s2 + $0x14] sm:$0xf]
    %v56 = vld [vmem:[%s2 + $0x18] sm:$0xf]
    %v57 = vld [vmem:[%s2 + $0x1c] sm:$0xf]
    %v58 = vld [vmem:[%s2 + $0x20] sm:$0xf]
    %v59 = vld [vmem:[%s2 + $0x24] sm:$0xf]
    %v60 = vld [vmem:[%s2 + $0x28] sm:$0xf]
    %v61 = vld [vmem:[%s2 + $0x2c] sm:$0xf]
    %v62 = vld [vmem:[%s2 + $0x30] sm:$0xf]
    %v63 = vld [vmem:[%s2 + $0x34] sm:$0xf]
    %v64 = vld [vmem:[%s2 + $0x38] sm:$0xf]
    %v65 = vld [vmem:[%s2 + $0x3c] sm:$0xf]
    %v66 = vld [vmem:[%s4] sm:$0xf]
    %v67 = vld [vmem:[%s4 + $0x4] sm:$0xf]
    %v68 = vld [vmem:[%s4 + $0x8] sm:$0xf]
    %v69 = vld [vmem:[%s4 + $0xc] sm:$0xf]
    %v70 = vld [vmem:[%s4 + $0x10] sm:$0xf]
    %v71 = vld [vmem:[%s4 + $0x14] sm:$0xf]
    %v72 = vld [vmem:[%s4 + $0x18] sm:$0xf]
    %v73 = vld [vmem:[%s4 + $0x1c] sm:$0xf]
    %v74 = vld [vmem:[%s4 + $0x20] sm:$0xf]
    %v75 = vld [vmem:[%s4 + $0x24] sm:$0xf]
    %v76 = vld [vmem:[%s4 + $0x28] sm:$0xf]
    %v77 = vld [vmem:[%s4 + $0x2c] sm:$0xf]
    %v78 = vld [vmem:[%s4 + $0x30] sm:$0xf]
    %v79 = vld [vmem:[%s4 + $0x34] sm:$0xf]
    %v80 = vld [vmem:[%s4 + $0x38] sm:$0xf]
    %v81 = vld [vmem:[%s4 + $0x3c] sm:$0xf]
    %v82 = vld [vmem:[%s3] sm:$0x1]
    %v84 = vperm.slane %v82, 0
    %v86 = vld [vmem:[%s5] sm:$0x1]
    %v88 = vperm.slane %v86, 0
    %v90 = vld [vmem:[#allocation2] sm:$0xff]
    %v91 = vld [vmem:[#allocation2 + $0x8] sm:$0xff]
    %v92 = vld [vmem:[#allocation2 + $0x10] sm:$0xff]
    %v93 = vld [vmem:[#allocation2 + $0x18] sm:$0xff]
    %v94 = vld [vmem:[#allocation2 + $0x20] sm:$0xff]
    %s95 = smul.u32 0, 8
    %s96 = sld [smem:[#allocation3 + %s95]]
    %v97 = vpack.c.bf16 %v91, %v90
    %v98 = vpack.c.bf16 %v93, %v92
    %v99 = vpack.c.bf16 %v94, %v94
    %v116 = vunpack.c.l.b16 %v50
    %v117 = vunpack.c.l.b16 %v51
    %v118 = vunpack.c.l.b16 %v52
    %v119 = vunpack.c.l.b16 %v53
    %v120 = vunpack.c.l.b16 %v54
    %v121 = vunpack.c.l.b16 %v55
    %v122 = vunpack.c.l.b16 %v56
    %v123 = vunpack.c.l.b16 %v57
    %v124 = vunpack.c.l.b16 %v58
    %v125 = vunpack.c.l.b16 %v59
    %v126 = vunpack.c.l.b16 %v60
    %v127 = vunpack.c.l.b16 %v61
    %v128 = vunpack.c.l.b16 %v62
    %v129 = vunpack.c.l.b16 %v63
    %v130 = vunpack.c.l.b16 %v64
    %v131 = vunpack.c.l.b16 %v65
    %v132 = vpack.c.b16 %v117, %v116
    %v133 = vpack.c.b16 %v119, %v118
    %v134 = vpack.c.b16 %v121, %v120
    %v135 = vpack.c.b16 %v123, %v122
    %v136 = vpack.c.b16 %v125, %v124
    %v137 = vpack.c.b16 %v127, %v126
    %v138 = vpack.c.b16 %v129, %v128
    %v139 = vpack.c.b16 %v131, %v130
    %148 = vmatpush.bf16.msra.mxu0 %v139
    %149 = vmatpush.bf16.msra.mxu0 %v138
    %150 = vmatpush.bf16.msra.mxu0 %v137
    %151 = vmatpush.bf16.msra.mxu0 %v136
    %152 = vmatpush.bf16.msra.mxu0 %v135
    %153 = vmatpush.bf16.msra.mxu0 %v134
    %154 = vmatpush.bf16.msra.mxu0 %v133
    %155 = vmatpush.bf16.msra.mxu0 %v132
    %156 = vmatmul.bf16.gmra.mxu0 %v97
    %v157 = vpop.f32.mrf.mxu0
    %v158 = vadd.f32 %v84, %v157
    %v159 = vpop.f32.mrf.mxu0
    %v160 = vadd.f32 %v84, %v159
    %161 = vmatmul.bf16.gmra.mxu0 %v98
    %v162 = vpop.f32.mrf.mxu0
    %v163 = vadd.f32 %v84, %v162
    %v164 = vpop.f32.mrf.mxu0
    %v165 = vadd.f32 %v84, %v164
    %166 = vmatmul.bf16.gmra.mxu0 %v99
    %v167 = vpop.f32.mrf.mxu0
    %v168 = vadd.f32 %v84, %v167
    %v169 = vpop.f32.mrf.mxu0
    %170 = vdwg.mxu0
    %v171 = vtanh.pop %v158
    %v172 = vtanh.pop %v160
    %v173 = vtanh.pop %v163
    %v174 = vtanh.pop %v165
    %v175 = vtanh.pop %v168
    %v176 = vpack.c.bf16 %v172, %v171
    %v177 = vpack.c.bf16 %v174, %v173
    %v178 = vpack.c.bf16 %v175, %v175
    %v195 = vunpack.c.l.b16 %v66
    %v196 = vunpack.c.l.b16 %v67
    %v197 = vunpack.c.l.b16 %v68
    %v198 = vunpack.c.l.b16 %v69
    %v199 = vunpack.c.l.b16 %v70
    %v200 = vunpack.c.l.b16 %v71
    %v201 = vunpack.c.l.b16 %v72
    %v202 = vunpack.c.l.b16 %v73
    %v203 = vunpack.c.l.b16 %v74
    %v204 = vunpack.c.l.b16 %v75
    %v205 = vunpack.c.l.b16 %v76
    %v206 = vunpack.c.l.b16 %v77
    %v207 = vunpack.c.l.b16 %v78
    %v208 = vunpack.c.l.b16 %v79
    %v209 = vunpack.c.l.b16 %v80
    %v210 = vunpack.c.l.b16 %v81
    %v211 = vpack.c.b16 %v196, %v195
    %v212 = vpack.c.b16 %v198, %v197
    %v213 = vpack.c.b16 %v200, %v199
    %v214 = vpack.c.b16 %v202, %v201
    %v215 = vpack.c.b16 %v204, %v203
    %v216 = vpack.c.b16 %v206, %v205
    %v217 = vpack.c.b16 %v208, %v207
    %v218 = vpack.c.b16 %v210, %v209
    %227 = vmatpush.bf16.msra.mxu0 %v218
    %228 = vmatpush.bf16.msra.mxu0 %v217
    %229 = vmatpush.bf16.msra.mxu0 %v216
    %230 = vmatpush.bf16.msra.mxu0 %v215
    %231 = vmatpush.bf16.msra.mxu0 %v214
    %232 = vmatpush.bf16.msra.mxu0 %v213
    %233 = vmatpush.bf16.msra.mxu0 %v212
    %234 = vmatpush.bf16.msra.mxu0 %v211
    %235 = vmatmul.bf16.gmra.mxu0 %v176
    %v236 = vpop.f32.mrf.mxu0
    %v237 = vadd.f32 %v88, %v236
    %v238 = vpop.f32.mrf.mxu0
    %v239 = vadd.f32 %v88, %v238
    %240 = vmatmul.bf16.gmra.mxu0 %v177
    %v241 = vpop.f32.mrf.mxu0
    %v242 = vadd.f32 %v88, %v241
    %v243 = vpop.f32.mrf.mxu0
    %v244 = vadd.f32 %v88, %v243
    %245 = vmatmul.bf16.gmra.mxu0 %v178
    %v246 = vpop.f32.mrf.mxu0
    %v247 = vadd.f32 %v88, %v246
    %v248 = vpop.f32.mrf.mxu0
    %249 = vdwg.mxu0
    %v250 = vstv %s96
    %v251 = vmul.f32 %v250, %v237
    %v252 = vmul.f32 %v250, %v239
    %v253 = vmul.f32 %v250, %v242
    %v254 = vmul.f32 %v250, %v244
    %v255 = vmul.f32 %v250, %v247
    %v256 = vadd.f32 %v90, %v251
    %v257 = vadd.f32 %v91, %v252
    %v258 = vadd.f32 %v92, %v253
    %v259 = vadd.f32 %v93, %v254
    %v260 = vadd.f32 %v94, %v255
    %261 = vst [vmem:[%s6] sm:$0xff] %v256
    %262 = vst [vmem:[%s6 + $0x8] sm:$0xff] %v257
    %263 = vst [vmem:[%s6 + $0x10] sm:$0xff] %v258
    %264 = vst [vmem:[%s6 + $0x18] sm:$0xff] %v259
    %265 = vst [vmem:[%s6 + $0x20] sm:$0xff] %v260
    %s266 = sadd.s32 %s95, 1
    %s267 = sld [smem:[#allocation3 + %s266]]
    %v268 = vpack.c.bf16 %v257, %v256
    %v269 = vpack.c.bf16 %v259, %v258
    %v270 = vpack.c.bf16 %v260, %v260
    %271 = vmatpush.bf16.msra.mxu0 %v139
    %272 = vmatpush.bf16.msra.mxu0 %v138
    %273 = vmatpush.bf16.msra.mxu0 %v137
    %274 = vmatpush.bf16.msra.mxu0 %v136
    %275 = vmatpush.bf16.msra.mxu0 %v135
    %276 = vmatpush.bf16.msra.mxu0 %v134
    %277 = vmatpush.bf16.msra.mxu0 %v133
    %278 = vmatpush.bf16.msra.mxu0 %v132
    %279 = vmatmul.bf16.gmra.mxu0 %v268
    %v280 = vpop.f32.mrf.mxu0
    %v281 = vadd.f32 %v84, %v280
    %v282 = vpop.f32.mrf.mxu0
    %v283 = vadd.f32 %v84, %v282
    %284 = vmatmul.bf16.gmra.mxu0 %v269
    %v285 = vpop.f32.mrf.mxu0
    %v286 = vadd.f32 %v84, %v285
    %v287 = vpop.f32.mrf.mxu0
    %v288 = vadd.f32 %v84, %v287
    %289 = vmatmul.bf16.gmra.mxu0 %v270
    %v290 = vpop.f32.mrf.mxu0
    %v291 = vadd.f32 %v84, %v290
    %v292 = vpop.f32.mrf.mxu0
    %293 = vdwg.mxu0
    %v294 = vtanh.pop %v281
    %v295 = vtanh.pop %v283
    %v296 = vtanh.pop %v286
    %v297 = vtanh.pop %v288
    %v298 = vtanh.pop %v291
    %v299 = vpack.c.bf16 %v295, %v294
    %v300 = vpack.c.bf16 %v297, %v296
    %v301 = vpack.c.bf16 %v298, %v298
    %302 = vmatpush.bf16.msra.mxu0 %v218
    %303 = vmatpush.bf16.msra.mxu0 %v217
    %304 = vmatpush.bf16.msra.mxu0 %v216
    %305 = vmatpush.bf16.msra.mxu0 %v215
    %306 = vmatpush.bf16.msra.mxu0 %v214
    %307 = vmatpush.bf16.msra.mxu0 %v213
    %308 = vmatpush.bf16.msra.mxu0 %v212
    %309 = vmatpush.bf16.msra.mxu0 %v211
    %310 = vmatmul.bf16.gmra.mxu0 %v299
    %v311 = vpop.f32.mrf.mxu0
    %v312 = vadd.f32 %v88, %v311
    %v313 = vpop.f32.mrf.mxu0
    %v314 = vadd.f32 %v88, %v313
    %315 = vmatmul.bf16.gmra.mxu0 %v300
    %v316 = vpop.f32.mrf.mxu0
    %v317 = vadd.f32 %v88, %v316
    %v318 = vpop.f32.mrf.mxu0
    %v319 = vadd.f32 %v88, %v318
    %320 = vmatmul.bf16.gmra.mxu0 %v301
    %v321 = vpop.f32.mrf.mxu0
    %v322 = vadd.f32 %v88, %v321
    %v323 = vpop.f32.mrf.mxu0
    %324 = vdwg.mxu0
    %v325 = vstv %s267
    %v326 = vmul.f32 %v325, %v312
    %v327 = vmul.f32 %v325, %v314
    %v328 = vmul.f32 %v325, %v317
    %v329 = vmul.f32 %v325, %v319
    %v330 = vmul.f32 %v325, %v322
    %v331 = vadd.f32 %v256, %v326
    %v332 = vadd.f32 %v257, %v327
    %v333 = vadd.f32 %v258, %v328
    %v334 = vadd.f32 %v259, %v329
    %v335 = vadd.f32 %v260, %v330
    %s336 = scalar_lea.vmem %s6, 40
    %337 = vst [vmem:[%s336] sm:$0xff] %v331
    %338 = vst [vmem:[%s336 + $0x8] sm:$0xff] %v332
    %339 = vst [vmem:[%s336 + $0x10] sm:$0xff] %v333
    %340 = vst [vmem:[%s336 + $0x18] sm:$0xff] %v334
    %341 = vst [vmem:[%s336 + $0x20] sm:$0xff] %v335
    %s342 = sadd.s32 %s95, 2
    %s343 = sld [smem:[#allocation3 + %s342]]
    %v344 = vpack.c.bf16 %v332, %v331
    %v345 = vpack.c.bf16 %v334, %v333
    %v346 = vpack.c.bf16 %v335, %v335
    %347 = vmatpush.bf16.msra.mxu0 %v139
    %348 = vmatpush.bf16.msra.mxu0 %v138
    %349 = vmatpush.bf16.msra.mxu0 %v137
    %350 = vmatpush.bf16.msra.mxu0 %v136
    %351 = vmatpush.bf16.msra.mxu0 %v135
    %352 = vmatpush.bf16.msra.mxu0 %v134
    %353 = vmatpush.bf16.msra.mxu0 %v133
    %354 = vmatpush.bf16.msra.mxu0 %v132
    %355 = vmatmul.bf16.gmra.mxu0 %v344
    %v356 = vpop.f32.mrf.mxu0
    %v357 = vadd.f32 %v84, %v356
    %v358 = vpop.f32.mrf.mxu0
    %v359 = vadd.f32 %v84, %v358
    %360 = vmatmul.bf16.gmra.mxu0 %v345
    %v361 = vpop.f32.mrf.mxu0
    %v362 = vadd.f32 %v84, %v361
    %v363 = vpop.f32.mrf.mxu0
    %v364 = vadd.f32 %v84, %v363
    %365 = vmatmul.bf16.gmra.mxu0 %v346
    %v366 = vpop.f32.mrf.mxu0
    %v367 = vadd.f32 %v84, %v366
    %v368 = vpop.f32.mrf.mxu0
    %369 = vdwg.mxu0
    %v370 = vtanh.pop %v357
    %v371 = vtanh.pop %v359
    %v372 = vtanh.pop %v362
    %v373 = vtanh.pop %v364
    %v374 = vtanh.pop %v367
    %v375 = vpack.c.bf16 %v371, %v370
    %v376 = vpack.c.bf16 %v373, %v372
    %v377 = vpack.c.bf16 %v374, %v374
    %378 = vmatpush.bf16.msra.mxu0 %v218
    %379 = vmatpush.bf16.msra.mxu0 %v217
    %380 = vmatpush.bf16.msra.mxu0 %v216
    %381 = vmatpush.bf16.msra.mxu0 %v215
    %382 = vmatpush.bf16.msra.mxu0 %v214
    %383 = vmatpush.bf16.msra.mxu0 %v213
    %384 = vmatpush.bf16.msra.mxu0 %v212
    %385 = vmatpush.bf16.msra.mxu0 %v211
    %386 = vmatmul.bf16.gmra.mxu0 %v375
    %v387 = vpop.f32.mrf.mxu0
    %v388 = vadd.f32 %v88, %v387
    %v389 = vpop.f32.mrf.mxu0
    %v390 = vadd.f32 %v88, %v389
    %391 = vmatmul.bf16.gmra.mxu0 %v376
    %v392 = vpop.f32.mrf.mxu0
    %v393 = vadd.f32 %v88, %v392
    %v394 = vpop.f32.mrf.mxu0
    %v395 = vadd.f32 %v88, %v394
    %396 = vmatmul.bf16.gmra.mxu0 %v377
    %v397 = vpop.f32.mrf.mxu0
    %v398 = vadd.f32 %v88, %v397
    %v399 = vpop.f32.mrf.mxu0
    %400 = vdwg.mxu0
    %v401 = vstv %s343
    %v402 = vmul.f32 %v401, %v388
    %v403 = vmul.f32 %v401, %v390
    %v404 = vmul.f32 %v401, %v393
    %v405 = vmul.f32 %v401, %v395
    %v406 = vmul.f32 %v401, %v398
    %v407 = vadd.f32 %v331, %v402
    %v408 = vadd.f32 %v332, %v403
    %v409 = vadd.f32 %v333, %v404
    %v410 = vadd.f32 %v334, %v405
    %v411 = vadd.f32 %v335, %v406
    %s412 = scalar_lea.vmem %s6, 80
    %413 = vst [vmem:[%s412] sm:$0xff] %v407
    %414 = vst [vmem:[%s412 + $0x8] sm:$0xff] %v408
    %415 = vst [vmem:[%s412 + $0x10] sm:$0xff] %v409
    %416 = vst [vmem:[%s412 + $0x18] sm:$0xff] %v410
    %417 = vst [vmem:[%s412 + $0x20] sm:$0xff] %v411
    %s418 = sadd.s32 %s95, 3
    %s419 = sld [smem:[#allocation3 + %s418]]
    %v420 = vpack.c.bf16 %v408, %v407
    %v421 = vpack.c.bf16 %v410, %v409
    %v422 = vpack.c.bf16 %v411, %v411
    %423 = vmatpush.bf16.msra.mxu0 %v139
    %424 = vmatpush.bf16.msra.mxu0 %v138
    %425 = vmatpush.bf16.msra.mxu0 %v137
    %426 = vmatpush.bf16.msra.mxu0 %v136
    %427 = vmatpush.bf16.msra.mxu0 %v135
    %428 = vmatpush.bf16.msra.mxu0 %v134
    %429 = vmatpush.bf16.msra.mxu0 %v133
    %430 = vmatpush.bf16.msra.mxu0 %v132
    %431 = vmatmul.bf16.gmra.mxu0 %v420
    %v432 = vpop.f32.mrf.mxu0
    %v433 = vadd.f32 %v84, %v432
    %v434 = vpop.f32.mrf.mxu0
    %v435 = vadd.f32 %v84, %v434
    %436 = vmatmul.bf16.gmra.mxu0 %v421
    %v437 = vpop.f32.mrf.mxu0
    %v438 = vadd.f32 %v84, %v437
    %v439 = vpop.f32.mrf.mxu0
    %v440 = vadd.f32 %v84, %v439
    %441 = vmatmul.bf16.gmra.mxu0 %v422
    %v442 = vpop.f32.mrf.mxu0
    %v443 = vadd.f32 %v84, %v442
    %v444 = vpop.f32.mrf.mxu0
    %445 = vdwg.mxu0
    %v446 = vtanh.pop %v433
    %v447 = vtanh.pop %v435
    %v448 = vtanh.pop %v438
    %v449 = vtanh.pop %v440
    %v450 = vtanh.pop %v443
    %v451 = vpack.c.bf16 %v447, %v446
    %v452 = vpack.c.bf16 %v449, %v448
    %v453 = vpack.c.bf16 %v450, %v450
    %454 = vmatpush.bf16.msra.mxu0 %v218
    %455 = vmatpush.bf16.msra.mxu0 %v217
    %456 = vmatpush.bf16.msra.mxu0 %v216
    %457 = vmatpush.bf16.msra.mxu0 %v215
    %458 = vmatpush.bf16.msra.mxu0 %v214
    %459 = vmatpush.bf16.msra.mxu0 %v213
    %460 = vmatpush.bf16.msra.mxu0 %v212
    %461 = vmatpush.bf16.msra.mxu0 %v211
    %462 = vmatmul.bf16.gmra.mxu0 %v451
    %v463 = vpop.f32.mrf.mxu0
    %v464 = vadd.f32 %v88, %v463
    %v465 = vpop.f32.mrf.mxu0
    %v466 = vadd.f32 %v88, %v465
    %467 = vmatmul.bf16.gmra.mxu0 %v452
    %v468 = vpop.f32.mrf.mxu0
    %v469 = vadd.f32 %v88, %v468
    %v470 = vpop.f32.mrf.mxu0
    %v471 = vadd.f32 %v88, %v470
    %472 = vmatmul.bf16.gmra.mxu0 %v453
    %v473 = vpop.f32.mrf.mxu0
    %v474 = vadd.f32 %v88, %v473
    %v475 = vpop.f32.mrf.mxu0
    %476 = vdwg.mxu0
    %v477 = vstv %s419
    %v478 = vmul.f32 %v477, %v464
    %v479 = vmul.f32 %v477, %v466
    %v480 = vmul.f32 %v477, %v469
    %v481 = vmul.f32 %v477, %v471
    %v482 = vmul.f32 %v477, %v474
    %v483 = vadd.f32 %v407, %v478
    %v484 = vadd.f32 %v408, %v479
    %v485 = vadd.f32 %v409, %v480
    %v486 = vadd.f32 %v410, %v481
    %v487 = vadd.f32 %v411, %v482
    %s488 = scalar_lea.vmem %s6, 120
    %489 = vst [vmem:[%s488] sm:$0xff] %v483
    %490 = vst [vmem:[%s488 + $0x8] sm:$0xff] %v484
    %491 = vst [vmem:[%s488 + $0x10] sm:$0xff] %v485
    %492 = vst [vmem:[%s488 + $0x18] sm:$0xff] %v486
    %493 = vst [vmem:[%s488 + $0x20] sm:$0xff] %v487
    %s494 = sadd.s32 %s95, 4
    %s495 = sld [smem:[#allocation3 + %s494]]
    %v496 = vpack.c.bf16 %v484, %v483
    %v497 = vpack.c.bf16 %v486, %v485
    %v498 = vpack.c.bf16 %v487, %v487
    %499 = vmatpush.bf16.msra.mxu0 %v139
    %500 = vmatpush.bf16.msra.mxu0 %v138
    %501 = vmatpush.bf16.msra.mxu0 %v137
    %502 = vmatpush.bf16.msra.mxu0 %v136
    %503 = vmatpush.bf16.msra.mxu0 %v135
    %504 = vmatpush.bf16.msra.mxu0 %v134
    %505 = vmatpush.bf16.msra.mxu0 %v133
    %506 = vmatpush.bf16.msra.mxu0 %v132
    %507 = vmatmul.bf16.gmra.mxu0 %v496
    %v508 = vpop.f32.mrf.mxu0
    %v509 = vadd.f32 %v84, %v508
    %v510 = vpop.f32.mrf.mxu0
    %v511 = vadd.f32 %v84, %v510
    %512 = vmatmul.bf16.gmra.mxu0 %v497
    %v513 = vpop.f32.mrf.mxu0
    %v514 = vadd.f32 %v84, %v513
    %v515 = vpop.f32.mrf.mxu0
    %v516 = vadd.f32 %v84, %v515
    %517 = vmatmul.bf16.gmra.mxu0 %v498
    %v518 = vpop.f32.mrf.mxu0
    %v519 = vadd.f32 %v84, %v518
    %v520 = vpop.f32.mrf.mxu0
    %521 = vdwg.mxu0
    %v522 = vtanh.pop %v509
    %v523 = vtanh.pop %v511
    %v524 = vtanh.pop %v514
    %v525 = vtanh.pop %v516
    %v526 = vtanh.pop %v519
    %v527 = vpack.c.bf16 %v523, %v522
    %v528 = vpack.c.bf16 %v525, %v524
    %v529 = vpack.c.bf16 %v526, %v526
    %530 = vmatpush.bf16.msra.mxu0 %v218
    %531 = vmatpush.bf16.msra.mxu0 %v217
    %532 = vmatpush.bf16.msra.mxu0 %v216
    %533 = vmatpush.bf16.msra.mxu0 %v215
    %534 = vmatpush.bf16.msra.mxu0 %v214
    %535 = vmatpush.bf16.msra.mxu0 %v213
    %536 = vmatpush.bf16.msra.mxu0 %v212
    %537 = vmatpush.bf16.msra.mxu0 %v211
    %538 = vmatmul.bf16.gmra.mxu0 %v527
    %v539 = vpop.f32.mrf.mxu0
    %v540 = vadd.f32 %v88, %v539
    %v541 = vpop.f32.mrf.mxu0
    %v542 = vadd.f32 %v88, %v541
    %543 = vmatmul.bf16.gmra.mxu0 %v528
    %v544 = vpop.f32.mrf.mxu0
    %v545 = vadd.f32 %v88, %v544
    %v546 = vpop.f32.mrf.mxu0
    %v547 = vadd.f32 %v88, %v546
    %548 = vmatmul.bf16.gmra.mxu0 %v529
    %v549 = vpop.f32.mrf.mxu0
    %v550 = vadd.f32 %v88, %v549
    %v551 = vpop.f32.mrf.mxu0
    %552 = vdwg.mxu0
    %v553 = vstv %s495
    %v554 = vmul.f32 %v553, %v540
    %v555 = vmul.f32 %v553, %v542
    %v556 = vmul.f32 %v553, %v545
    %v557 = vmul.f32 %v553, %v547
    %v558 = vmul.f32 %v553, %v550
    %v559 = vadd.f32 %v483, %v554
    %v560 = vadd.f32 %v484, %v555
    %v561 = vadd.f32 %v485, %v556
    %v562 = vadd.f32 %v486, %v557
    %v563 = vadd.f32 %v487, %v558
    %s564 = scalar_lea.vmem %s6, 160
    %565 = vst [vmem:[%s564] sm:$0xff] %v559
    %566 = vst [vmem:[%s564 + $0x8] sm:$0xff] %v560
    %567 = vst [vmem:[%s564 + $0x10] sm:$0xff] %v561
    %568 = vst [vmem:[%s564 + $0x18] sm:$0xff] %v562
    %569 = vst [vmem:[%s564 + $0x20] sm:$0xff] %v563
    %s570 = sadd.s32 %s95, 5
    %s571 = sld [smem:[#allocation3 + %s570]]
    %v572 = vpack.c.bf16 %v560, %v559
    %v573 = vpack.c.bf16 %v562, %v561
    %v574 = vpack.c.bf16 %v563, %v563
    %575 = vmatpush.bf16.msra.mxu0 %v139
    %576 = vmatpush.bf16.msra.mxu0 %v138
    %577 = vmatpush.bf16.msra.mxu0 %v137
    %578 = vmatpush.bf16.msra.mxu0 %v136
    %579 = vmatpush.bf16.msra.mxu0 %v135
    %580 = vmatpush.bf16.msra.mxu0 %v134
    %581 = vmatpush.bf16.msra.mxu0 %v133
    %582 = vmatpush.bf16.msra.mxu0 %v132
    %583 = vmatmul.bf16.gmra.mxu0 %v572
    %v584 = vpop.f32.mrf.mxu0
    %v585 = vadd.f32 %v84, %v584
    %v586 = vpop.f32.mrf.mxu0
    %v587 = vadd.f32 %v84, %v586
    %588 = vmatmul.bf16.gmra.mxu0 %v573
    %v589 = vpop.f32.mrf.mxu0
    %v590 = vadd.f32 %v84, %v589
    %v591 = vpop.f32.mrf.mxu0
    %v592 = vadd.f32 %v84, %v591
    %593 = vmatmul.bf16.gmra.mxu0 %v574
    %v594 = vpop.f32.mrf.mxu0
    %v595 = vadd.f32 %v84, %v594
    %v596 = vpop.f32.mrf.mxu0
    %597 = vdwg.mxu0
    %v598 = vtanh.pop %v585
    %v599 = vtanh.pop %v587
    %v600 = vtanh.pop %v590
    %v601 = vtanh.pop %v592
    %v602 = vtanh.pop %v595
    %v603 = vpack.c.bf16 %v599, %v598
    %v604 = vpack.c.bf16 %v601, %v600
    %v605 = vpack.c.bf16 %v602, %v602
    %606 = vmatpush.bf16.msra.mxu0 %v218
    %607 = vmatpush.bf16.msra.mxu0 %v217
    %608 = vmatpush.bf16.msra.mxu0 %v216
    %609 = vmatpush.bf16.msra.mxu0 %v215
    %610 = vmatpush.bf16.msra.mxu0 %v214
    %611 = vmatpush.bf16.msra.mxu0 %v213
    %612 = vmatpush.bf16.msra.mxu0 %v212
    %613 = vmatpush.bf16.msra.mxu0 %v211
    %614 = vmatmul.bf16.gmra.mxu0 %v603
    %v615 = vpop.f32.mrf.mxu0
    %v616 = vadd.f32 %v88, %v615
    %v617 = vpop.f32.mrf.mxu0
    %v618 = vadd.f32 %v88, %v617
    %619 = vmatmul.bf16.gmra.mxu0 %v604
    %v620 = vpop.f32.mrf.mxu0
    %v621 = vadd.f32 %v88, %v620
    %v622 = vpop.f32.mrf.mxu0
    %v623 = vadd.f32 %v88, %v622
    %624 = vmatmul.bf16.gmra.mxu0 %v605
    %v625 = vpop.f32.mrf.mxu0
    %v626 = vadd.f32 %v88, %v625
    %v627 = vpop.f32.mrf.mxu0
    %628 = vdwg.mxu0
    %v629 = vstv %s571
    %v630 = vmul.f32 %v629, %v616
    %v631 = vmul.f32 %v629, %v618
    %v632 = vmul.f32 %v629, %v621
    %v633 = vmul.f32 %v629, %v623
    %v634 = vmul.f32 %v629, %v626
    %v635 = vadd.f32 %v559, %v630
    %v636 = vadd.f32 %v560, %v631
    %v637 = vadd.f32 %v561, %v632
    %v638 = vadd.f32 %v562, %v633
    %v639 = vadd.f32 %v563, %v634
    %s640 = scalar_lea.vmem %s6, 200
    %641 = vst [vmem:[%s640] sm:$0xff] %v635
    %642 = vst [vmem:[%s640 + $0x8] sm:$0xff] %v636
    %643 = vst [vmem:[%s640 + $0x10] sm:$0xff] %v637
    %644 = vst [vmem:[%s640 + $0x18] sm:$0xff] %v638
    %645 = vst [vmem:[%s640 + $0x20] sm:$0xff] %v639
    %s646 = sadd.s32 %s95, 6
    %s647 = sld [smem:[#allocation3 + %s646]]
    %v648 = vpack.c.bf16 %v636, %v635
    %v649 = vpack.c.bf16 %v638, %v637
    %v650 = vpack.c.bf16 %v639, %v639
    %651 = vmatpush.bf16.msra.mxu0 %v139
    %652 = vmatpush.bf16.msra.mxu0 %v138
    %653 = vmatpush.bf16.msra.mxu0 %v137
    %654 = vmatpush.bf16.msra.mxu0 %v136
    %655 = vmatpush.bf16.msra.mxu0 %v135
    %656 = vmatpush.bf16.msra.mxu0 %v134
    %657 = vmatpush.bf16.msra.mxu0 %v133
    %658 = vmatpush.bf16.msra.mxu0 %v132
    %659 = vmatmul.bf16.gmra.mxu0 %v648
    %v660 = vpop.f32.mrf.mxu0
    %v661 = vadd.f32 %v84, %v660
    %v662 = vpop.f32.mrf.mxu0
    %v663 = vadd.f32 %v84, %v662
    %664 = vmatmul.bf16.gmra.mxu0 %v649
    %v665 = vpop.f32.mrf.mxu0
    %v666 = vadd.f32 %v84, %v665
    %v667 = vpop.f32.mrf.mxu0
    %v668 = vadd.f32 %v84, %v667
    %669 = vmatmul.bf16.gmra.mxu0 %v650
    %v670 = vpop.f32.mrf.mxu0
    %v671 = vadd.f32 %v84, %v670
    %v672 = vpop.f32.mrf.mxu0
    %673 = vdwg.mxu0
    %v674 = vtanh.pop %v661
    %v675 = vtanh.pop %v663
    %v676 = vtanh.pop %v666
    %v677 = vtanh.pop %v668
    %v678 = vtanh.pop %v671
    %v679 = vpack.c.bf16 %v675, %v674
    %v680 = vpack.c.bf16 %v677, %v676
    %v681 = vpack.c.bf16 %v678, %v678
    %682 = vmatpush.bf16.msra.mxu0 %v218
    %683 = vmatpush.bf16.msra.mxu0 %v217
    %684 = vmatpush.bf16.msra.mxu0 %v216
    %685 = vmatpush.bf16.msra.mxu0 %v215
    %686 = vmatpush.bf16.msra.mxu0 %v214
    %687 = vmatpush.bf16.msra.mxu0 %v213
    %688 = vmatpush.bf16.msra.mxu0 %v212
    %689 = vmatpush.bf16.msra.mxu0 %v211
    %690 = vmatmul.bf16.gmra.mxu0 %v679
    %v691 = vpop.f32.mrf.mxu0
    %v692 = vadd.f32 %v88, %v691
    %v693 = vpop.f32.mrf.mxu0
    %v694 = vadd.f32 %v88, %v693
    %695 = vmatmul.bf16.gmra.mxu0 %v680
    %v696 = vpop.f32.mrf.mxu0
    %v697 = vadd.f32 %v88, %v696
    %v698 = vpop.f32.mrf.mxu0
    %v699 = vadd.f32 %v88, %v698
    %700 = vmatmul.bf16.gmra.mxu0 %v681
    %v701 = vpop.f32.mrf.mxu0
    %v702 = vadd.f32 %v88, %v701
    %v703 = vpop.f32.mrf.mxu0
    %704 = vdwg.mxu0
    %v705 = vstv %s647
    %v706 = vmul.f32 %v705, %v692
    %v707 = vmul.f32 %v705, %v694
    %v708 = vmul.f32 %v705, %v697
    %v709 = vmul.f32 %v705, %v699
    %v710 = vmul.f32 %v705, %v702
    %v711 = vadd.f32 %v635, %v706
    %v712 = vadd.f32 %v636, %v707
    %v713 = vadd.f32 %v637, %v708
    %v714 = vadd.f32 %v638, %v709
    %v715 = vadd.f32 %v639, %v710
    %s716 = scalar_lea.vmem %s6, 240
    %717 = vst [vmem:[%s716] sm:$0xff] %v711
    %718 = vst [vmem:[%s716 + $0x8] sm:$0xff] %v712
    %719 = vst [vmem:[%s716 + $0x10] sm:$0xff] %v713
    %720 = vst [vmem:[%s716 + $0x18] sm:$0xff] %v714
    %721 = vst [vmem:[%s716 + $0x20] sm:$0xff] %v715
    %s722 = sadd.s32 %s95, 7
    %s723 = sld [smem:[#allocation3 + %s722]]
    %v724 = vpack.c.bf16 %v712, %v711
    %v725 = vpack.c.bf16 %v714, %v713
    %v726 = vpack.c.bf16 %v715, %v715
    %727 = vmatpush.bf16.msra.mxu0 %v139
    %728 = vmatpush.bf16.msra.mxu0 %v138
    %729 = vmatpush.bf16.msra.mxu0 %v137
    %730 = vmatpush.bf16.msra.mxu0 %v136
    %731 = vmatpush.bf16.msra.mxu0 %v135
    %732 = vmatpush.bf16.msra.mxu0 %v134
    %733 = vmatpush.bf16.msra.mxu0 %v133
    %734 = vmatpush.bf16.msra.mxu0 %v132
    %735 = vmatmul.bf16.gmra.mxu0 %v724
    %v736 = vpop.f32.mrf.mxu0
    %v737 = vadd.f32 %v84, %v736
    %v738 = vpop.f32.mrf.mxu0
    %v739 = vadd.f32 %v84, %v738
    %740 = vmatmul.bf16.gmra.mxu0 %v725
    %v741 = vpop.f32.mrf.mxu0
    %v742 = vadd.f32 %v84, %v741
    %v743 = vpop.f32.mrf.mxu0
    %v744 = vadd.f32 %v84, %v743
    %745 = vmatmul.bf16.gmra.mxu0 %v726
    %v746 = vpop.f32.mrf.mxu0
    %v747 = vadd.f32 %v84, %v746
    %v748 = vpop.f32.mrf.mxu0
    %749 = vdwg.mxu0
    %v750 = vtanh.pop %v737
    %v751 = vtanh.pop %v739
    %v752 = vtanh.pop %v742
    %v753 = vtanh.pop %v744
    %v754 = vtanh.pop %v747
    %v755 = vpack.c.bf16 %v751, %v750
    %v756 = vpack.c.bf16 %v753, %v752
    %v757 = vpack.c.bf16 %v754, %v754
    %758 = vmatpush.bf16.msra.mxu0 %v218
    %759 = vmatpush.bf16.msra.mxu0 %v217
    %760 = vmatpush.bf16.msra.mxu0 %v216
    %761 = vmatpush.bf16.msra.mxu0 %v215
    %762 = vmatpush.bf16.msra.mxu0 %v214
    %763 = vmatpush.bf16.msra.mxu0 %v213
    %764 = vmatpush.bf16.msra.mxu0 %v212
    %765 = vmatpush.bf16.msra.mxu0 %v211
    %766 = vmatmul.bf16.gmra.mxu0 %v755
    %v767 = vpop.f32.mrf.mxu0
    %v768 = vadd.f32 %v88, %v767
    %v769 = vpop.f32.mrf.mxu0
    %v770 = vadd.f32 %v88, %v769
    %771 = vmatmul.bf16.gmra.mxu0 %v756
    %v772 = vpop.f32.mrf.mxu0
    %v773 = vadd.f32 %v88, %v772
    %v774 = vpop.f32.mrf.mxu0
    %v775 = vadd.f32 %v88, %v774
    %776 = vmatmul.bf16.gmra.mxu0 %v757
    %v777 = vpop.f32.mrf.mxu0
    %v778 = vadd.f32 %v88, %v777
    %v779 = vpop.f32.mrf.mxu0
    %780 = vdwg.mxu0
    %v781 = vstv %s723
    %v782 = vmul.f32 %v781, %v768
    %v783 = vmul.f32 %v781, %v770
    %v784 = vmul.f32 %v781, %v773
    %v785 = vmul.f32 %v781, %v775
    %v786 = vmul.f32 %v781, %v778
    %v787 = vadd.f32 %v711, %v782
    %v788 = vadd.f32 %v712, %v783
    %v789 = vadd.f32 %v713, %v784
    %v790 = vadd.f32 %v714, %v785
    %v791 = vadd.f32 %v715, %v786
    %s792 = scalar_lea.vmem %s6, 280
    %793 = vst [vmem:[%s792] sm:$0xff] %v787
    %794 = vst [vmem:[%s792 + $0x8] sm:$0xff] %v788
    %795 = vst [vmem:[%s792 + $0x10] sm:$0xff] %v789
    %796 = vst [vmem:[%s792 + $0x18] sm:$0xff] %v790
    %797 = vst [vmem:[%s792 + $0x20] sm:$0xff] %v791
    %798 = vst [vmem:[#allocation2] sm:$0xff] %v787
    %799 = vst [vmem:[#allocation2 + $0x8] sm:$0xff] %v788
    %800 = vst [vmem:[#allocation2 + $0x10] sm:$0xff] %v789
    %801 = vst [vmem:[#allocation2 + $0x18] sm:$0xff] %v790
    %802 = vst [vmem:[#allocation2 + $0x20] sm:$0xff] %v791
    // Predicated region
    $region34: #{euler_solve_self.1} parent=1 // pred_check
      _
    $region35: #{euler_solve_self.1} parent=1 // pred_check_branch
      %804 = sbr.rel (0) target = $region37
    $region36: #{euler_solve_self.1} parent=1 // pred_region
      _
    $region37: #{euler_solve_self.1} parent=1 // pred_fallthru
      _
    // Predicated region
    $region38: #{euler_solve_self.1} parent=1 // pred_check
      _
    $region39: #{euler_solve_self.1} parent=1 // pred_check_branch
      %806 = sbr.rel (0) target = $region41
    $region40: #{euler_solve_self.1} parent=1 // pred_region
      _
    $region41: #{euler_solve_self.1} parent=1 // pred_fallthru
      _
    %807 = vsyncpa [#allocation4], 1

</llo_original>
